<compile_context>
chip_gen: v6e
topology: v6e:2x2x1
jax: 0.10.0
libtpu: 0.0.40
codegen_flags: <defaults>
</compile_context>

<pallas_src>
import functools

import jax
import jax.numpy as jnp
from jax.experimental import pallas as pl
from jax.experimental.pallas import tpu as pltpu


def _round_up(x: int, m: int) -> int:
    return (x + m - 1) // m * m


# ----------------------------------------------------------------- VMEM budgets
def _vmem_capacity_bytes() -> int:
    try:
        info = pltpu.get_tpu_info()
        cap = int(getattr(info, "vmem_capacity_bytes", 0) or 0)
        if cap > 0:
            return cap
    except Exception:
        pass
    return 64 * 1024 * 1024  # conservative: v7x per-TensorCore VMEM


def _vmem_budget_bytes() -> int:
    # ~1/8 of physical VMEM per pipelined input stream (16 MiB on v5e/v6e, 8 MiB on v7x).
    return max(4 * 1024 * 1024, _vmem_capacity_bytes() // 8)


def _vmem_limit_bytes() -> int:
    cap = _vmem_capacity_bytes()
    budget = _vmem_budget_bytes()
    # ~2.5x the per-stream budget, never above half of physical VMEM
    # (=> 40 MiB on 128 MiB chips, 32 MiB on v7x).
    return int(min(max(32 * 1024 * 1024, int(2.5 * budget)), cap // 2))


def _table_vmem_bytes(n_items: int, emb_dim: int, emb_dtype) -> int:
    itemsize = jnp.dtype(emb_dtype).itemsize
    sub_pack = max(1, 4 // itemsize) * 8                 # 8 rows f32, 16 rows bf16
    return _round_up(n_items, sub_pack) * _round_up(emb_dim, 128) * itemsize


def _sanitize_tile_b(tile_b: int, B: int) -> int:
    if tile_b >= B:
        return B
    return min(max(8, (tile_b // 8) * 8), B)


def _choose_tile_b_gathered(B: int, C: int, D: int, emb_dtype) -> int:
    itemsize = jnp.dtype(emb_dtype).itemsize
    sub_pack = max(1, 4 // itemsize) * 8
    slab = _round_up(C, sub_pack) * _round_up(D, 128) * itemsize   # one (C, D) VMEM slab
    budget = _vmem_budget_bytes()
    tb = (budget // (2 * slab)) // 8 * 8                 # double-buffered item block
    tb = max(8, min(tb, 2048))
    return _sanitize_tile_b(tb, B)


def _choose_tile_b_fused(B: int, C: int, D: int, n_items: int, emb_dtype) -> int:
    budget = _vmem_budget_bytes()
    n_pad = _round_up(n_items, 128)
    d_pad = _round_up(D, 128)
    c_pad = _round_up(C, 128)
    # Per batch row: bf16 user row (2 buffers), ids + out blocks (2 buffers), and a
    # few live f32 (n_items,)-wide intermediates (all_scores / mask / select).
    per_row = 2 * 2 * d_pad + 2 * 4 * c_pad + 6 * 4 * n_pad
    avail = budget - 2 * _table_vmem_bytes(n_items, D, emb_dtype)
    tb = max(8, (max(avail, per_row * 8) // per_row) // 8 * 8)
    return _sanitize_tile_b(min(tb, 1024), B)


# -------------------------------------------------------- fallback (pre-gathered)
def _score_gathered_kernel(u_ref, i_ref, o_ref):
    # u_ref: (tile_b, D) bf16, i_ref: (tile_b, C, D) bf16, o_ref: (tile_b, C) f32
    u = u_ref[...]
    it = i_ref[...]
    # Fused cast/multiply/f32-accumulate: no whole-block .astype (Mosaic inserts
    # per-vreg upcasts on v5e where no bf16 VALU exists).
    o_ref[...] = jnp.sum(it * u[:, None, :], axis=-1, dtype=jnp.float32)


def predict_scores(user_emb, item_emb, *, tile_b=None, item_buffers=2):
    """user_emb [B, D], item_emb [B, C, D] -> prediction [B, C] f32."""
    B, D = user_emb.shape
    _, C, _ = item_emb.shape
    if tile_b is None:
        tile_b = _choose_tile_b_gathered(B, C, D, item_emb.dtype)
    tile_b = _sanitize_tile_b(int(tile_b), B)

    grid = (pl.cdiv(B, tile_b),)
    if item_buffers != 2:
        item_spec = pl.BlockSpec((tile_b, C, D), lambda i: (i, 0, 0),
                                 pipeline_mode=pl.Buffered(int(item_buffers)))
    else:
        item_spec = pl.BlockSpec((tile_b, C, D), lambda i: (i, 0, 0))

    bytes_accessed = (user_emb.size * user_emb.dtype.itemsize
                      + item_emb.size * item_emb.dtype.itemsize + B * C * 4)
    cost = pl.CostEstimate(flops=2 * B * C * D, transcendentals=0,
                           bytes_accessed=int(bytes_accessed))

    return pl.pallas_call(
        _score_gathered_kernel,
        out_shape=jax.ShapeDtypeStruct((B, C), jnp.float32),
        grid=grid,
        in_specs=[pl.BlockSpec((tile_b, D), lambda i: (i, 0)), item_spec],
        out_specs=pl.BlockSpec((tile_b, C), lambda i: (i, 0)),
        compiler_params=pltpu.CompilerParams(
            dimension_semantics=("parallel",),
            vmem_limit_bytes=_vmem_limit_bytes()),
        cost_estimate=cost,
    )(user_emb, item_emb)


# ------------------------------------------------------- fused gather + score
def _score_fused_kernel(ids_ref, u_ref, tbl_ref, o_ref, *, n_candidates: int):
    # ids_ref: (tile_b, C) int32 ; u_ref: (tile_b, D) bf16
    # tbl_ref: (n_items, D) bf16 (resident across the whole grid) ; o_ref: (tile_b, C) f32
    u = u_ref[...]
    tbl = tbl_ref[...]
    # All user-x-item scores on the MXU with f32 accumulation; the gathered
    # [tile_b, C, D] embedding tile is never materialized.
    all_scores = jax.lax.dot_general(
        u, tbl, dimension_numbers=(((1,), (1,)), ((), ())),
        preferred_element_type=jnp.float32)               # (tile_b, n_items) f32
    ids = ids_ref[...]                                     # (tile_b, C) int32
    lane = jax.lax.broadcasted_iota(jnp.int32, all_scores.shape, 1)
    cols = []
    for c in range(n_candidates):                          # small static unroll
        idx_c = ids[:, c:c + 1]                            # (tile_b, 1)
        sel = jnp.where(lane == idx_c, all_scores, 0.0)    # lane-dense mask over n_items
        cols.append(jnp.sum(sel, axis=-1, keepdims=True))  # (tile_b, 1) f32
    o_ref[...] = jnp.concatenate(cols, axis=-1)


def predict_scores_fused(user_emb, item_ids, item_table, *, tile_b=None):
    """user_emb [B, D], item_ids [B, C] int32, item_table [n_items, D] -> [B, C] f32."""
    B, D = user_emb.shape
    _, C = item_ids.shape
    n_items, _ = item_table.shape
    if tile_b is None:
        tile_b = _choose_tile_b_fused(B, C, D, n_items, item_table.dtype)
    tile_b = _sanitize_tile_b(int(tile_b), B)

    grid = (pl.cdiv(B, tile_b),)
    bytes_accessed = (item_table.size * item_table.dtype.itemsize
                      + user_emb.size * user_emb.dtype.itemsize
                      + item_ids.size * 4 + B * C * 4)
    cost = pl.CostEstimate(flops=2 * B * n_items * D + 2 * B * C * n_items,
                           transcendentals=0, bytes_accessed=int(bytes_accessed))

    kernel = functools.partial(_score_fused_kernel, n_candidates=C)
    return pl.pallas_call(
        kernel,
        out_shape=jax.ShapeDtypeStruct((B, C), jnp.float32),
        grid=grid,
        in_specs=[
            pl.BlockSpec((tile_b, C), lambda i: (i, 0)),      # candidate ids
            pl.BlockSpec((tile_b, D), lambda i: (i, 0)),      # user embeddings
            pl.BlockSpec((n_items, D), lambda i: (0, 0)),     # item table, fetched once
        ],
        out_specs=pl.BlockSpec((tile_b, C), lambda i: (i, 0)),
        compiler_params=pltpu.CompilerParams(
            dimension_semantics=("parallel",),
            vmem_limit_bytes=_vmem_limit_bytes()),
        cost_estimate=cost,
    )(item_ids, user_emb, item_table)


# ------------------------------------------------------------------- model
class BaseModelJAX:
    """Minimal JAX analogue of BaseModel: bf16 embedding tables + Pallas forward."""

    def __init__(self, n_users: int, n_items: int, emb_dim: int, key,
                 emb_dtype=jnp.bfloat16):
        k_u, k_i = jax.random.split(key)
        # init_weights: Embedding ~ Normal(0, 0.01); stored bf16 to halve HBM traffic.
        self.user_table = (0.01 * jax.random.normal(
            k_u, (n_users, emb_dim), jnp.float32)).astype(emb_dtype)
        self.item_table = (0.01 * jax.random.normal(
            k_i, (n_items, emb_dim), jnp.float32)).astype(emb_dtype)

    def forward(self, feed_dict: dict) -> dict:
        user_ids = jnp.asarray(feed_dict['user_id'], dtype=jnp.int32)   # [B]
        item_ids = jnp.asarray(feed_dict['item_id'], dtype=jnp.int32)   # [B, C]
        _, C = item_ids.shape
        u_emb = jnp.take(self.user_table, user_ids, axis=0)             # [B, D] bf16

        n_items, D = self.item_table.shape
        table_fits = (2 * _table_vmem_bytes(n_items, D, self.item_table.dtype)
                      <= _vmem_budget_bytes() // 2)
        if table_fits and C <= 64:
            prediction = predict_scores_fused(u_emb, item_ids, self.item_table)
        else:
            # TODO(synk): manual double-buffered DMA row-gather for huge catalogs.
            i_emb = jnp.take(self.item_table, item_ids, axis=0)         # [B, C, D]
            prediction = predict_scores(u_emb, i_emb)
        return {'prediction': prediction}

    # TODO(synk): loss() is abstract in the PyTorch module; not implemented here.


if __name__ == "__main__":
    key = jax.random.PRNGKey(0)
    k_model, k_u, k_i = jax.random.split(key, 3)

    n_users, n_items, emb_dim = 64, 128, 32
    batch_size, n_candidates = 16, 8

    model = BaseModelJAX(n_users, n_items, emb_dim, k_model)

    user_ids = jax.random.randint(k_u, (batch_size,), 0, n_users, dtype=jnp.int32)
    item_ids = jax.random.randint(k_i, (batch_size, n_candidates), 0, n_items,
                                  dtype=jnp.int32)
    feed_dict = {'user_id': user_ids, 'item_id': item_ids,
                 'batch_size': batch_size, 'phase': 'test'}

    out_dict = model.forward(feed_dict)
    pred = jax.block_until_ready(out_dict['prediction'])
    assert pred.shape == (batch_size, n_candidates)

    # True-f32 reference on the (bf16-stored) embedding tables.
    u_f32 = jnp.take(model.user_table, user_ids, axis=0).astype(jnp.float32)
    i_f32 = jnp.take(model.item_table, item_ids, axis=0).astype(jnp.float32)
    ref_f32 = jnp.sum(i_f32 * u_f32[:, None, :], axis=-1)

    # Fused-gather path (default forward): MXU keeps exact f32 products.
    assert jnp.allclose(pred, ref_f32, atol=1e-5, rtol=1e-2), "fused path mismatch"

    # Fused path with a multi-step tiled grid (table resident across steps).
    u_emb = jnp.take(model.user_table, user_ids, axis=0)
    pred_fused_tiled = jax.block_until_ready(
        predict_scores_fused(u_emb, item_ids, model.item_table, tile_b=8))
    assert jnp.allclose(pred_fused_tiled, ref_f32, atol=1e-5, rtol=1e-2)

    # Fallback (pre-gathered) path, multi-step grid: bf16 products / f32 accumulation.
    i_emb = jnp.take(model.item_table, item_ids, axis=0)
    pred_gathered = jax.block_until_ready(predict_scores(u_emb, i_emb, tile_b=8))
    assert jnp.allclose(pred_gathered, ref_f32, atol=5e-5, rtol=5e-2)

    print("KERNEL_OK")
</pallas_src>

<mosaic_0001>
module attributes {stable_mosaic.version = 11 : i64} {
  func.func @_score_fused_kernel(%arg0: i32, %arg1: memref<16x8xi32, #tpu.memory_space<vmem>>, %arg2: memref<16x32xbf16, #tpu.memory_space<vmem>>, %arg3: memref<128x32xbf16, #tpu.memory_space<vmem>>, %arg4: memref<16x8xf32, #tpu.memory_space<vmem>>) attributes {dimension_semantics = [#tpu.dimension_semantics<parallel>], iteration_bounds = array<i64: 1>, scalar_prefetch = 0 : i64, scratch_operands = 0 : i64, tpu.core_type = #tpu.core_type<tc>, window_params = [{transform_indices = @transform_0, window_bounds = array<i64: 16, 8>}, {transform_indices = @transform_1, window_bounds = array<i64: 16, 32>}, {pipeline_mode = #tpu.pipeline_mode<synchronous>, transform_indices = @transform_2, window_bounds = array<i64: 128, 32>}, {transform_indices = @transform_3, window_bounds = array<i64: 16, 8>}]} {
    %c0 = arith.constant 0 : index
    %c0_0 = arith.constant 0 : index
    %0 = vector.load %arg2[%c0, %c0_0] : memref<16x32xbf16, #tpu.memory_space<vmem>>, vector<16x32xbf16>
    %c0_1 = arith.constant 0 : index
    %c0_2 = arith.constant 0 : index
    %1 = vector.load %arg3[%c0_1, %c0_2] : memref<128x32xbf16, #tpu.memory_space<vmem>>, vector<128x32xbf16>
    %cst = arith.constant dense<0.000000e+00> : vector<16x128xf32>
    %2 = tpu.matmul %0, %1, %cst {dimension_numbers = #tpu.dot_dimension_numbers<[1], [1], [0], [0], [0, 0, 1, 0], [], []>} : vector<16x32xbf16>, vector<128x32xbf16>, vector<16x128xf32> -> vector<16x128xf32>
    %c0_3 = arith.constant 0 : index
    %c0_4 = arith.constant 0 : index
    %3 = vector.load %arg1[%c0_3, %c0_4] : memref<16x8xi32, #tpu.memory_space<vmem>>, vector<16x8xi32>
    %4 = tpu.iota {dimensions = array<i32: 1>} : vector<16x128xi32>
    %5 = vector.extract_strided_slice %3 {offsets = [0, 0], sizes = [16, 1], strides = [1, 1]} : vector<16x8xi32> to vector<16x1xi32>
    %6 = vector.broadcast %5 : vector<16x1xi32> to vector<16x128xi32>
    %7 = arith.cmpi eq, %4, %6 : vector<16x128xi32>
    %cst_5 = arith.constant 0.000000e+00 : f32
    %8 = vector.broadcast %cst_5 : f32 to vector<16x128xf32>
    %9 = arith.select %7, %2, %8 : vector<16x128xi1>, vector<16x128xf32>
    %cst_6 = arith.constant dense<0.000000e+00> : vector<16xf32>
    %10 = vector.multi_reduction <add>, %9, %cst_6 [1] : vector<16x128xf32> to vector<16xf32>
    %11 = vector.shape_cast %10 : vector<16xf32> to vector<16x1xf32>
    %12 = vector.extract_strided_slice %3 {offsets = [0, 1], sizes = [16, 1], strides = [1, 1]} : vector<16x8xi32> to vector<16x1xi32>
    %13 = vector.broadcast %12 : vector<16x1xi32> to vector<16x128xi32>
    %14 = arith.cmpi eq, %4, %13 : vector<16x128xi32>
    %cst_7 = arith.constant 0.000000e+00 : f32
    %15 = vector.broadcast %cst_7 : f32 to vector<16x128xf32>
    %16 = arith.select %14, %2, %15 : vector<16x128xi1>, vector<16x128xf32>
    %cst_8 = arith.constant dense<0.000000e+00> : vector<16xf32>
    %17 = vector.multi_reduction <add>, %16, %cst_8 [1] : vector<16x128xf32> to vector<16xf32>
    %18 = vector.shape_cast %17 : vector<16xf32> to vector<16x1xf32>
    %19 = vector.extract_strided_slice %3 {offsets = [0, 2], sizes = [16, 1], strides = [1, 1]} : vector<16x8xi32> to vector<16x1xi32>
    %20 = vector.broadcast %19 : vector<16x1xi32> to vector<16x128xi32>
    %21 = arith.cmpi eq, %4, %20 : vector<16x128xi32>
    %cst_9 = arith.constant 0.000000e+00 : f32
    %22 = vector.broadcast %cst_9 : f32 to vector<16x128xf32>
    %23 = arith.select %21, %2, %22 : vector<16x128xi1>, vector<16x128xf32>
    %cst_10 = arith.constant dense<0.000000e+00> : vector<16xf32>
    %24 = vector.multi_reduction <add>, %23, %cst_10 [1] : vector<16x128xf32> to vector<16xf32>
    %25 = vector.shape_cast %24 : vector<16xf32> to vector<16x1xf32>
    %26 = vector.extract_strided_slice %3 {offsets = [0, 3], sizes = [16, 1], strides = [1, 1]} : vector<16x8xi32> to vector<16x1xi32>
    %27 = vector.broadcast %26 : vector<16x1xi32> to vector<16x128xi32>
    %28 = arith.cmpi eq, %4, %27 : vector<16x128xi32>
    %cst_11 = arith.constant 0.000000e+00 : f32
    %29 = vector.broadcast %cst_11 : f32 to vector<16x128xf32>
    %30 = arith.select %28, %2, %29 : vector<16x128xi1>, vector<16x128xf32>
    %cst_12 = arith.constant dense<0.000000e+00> : vector<16xf32>
    %31 = vector.multi_reduction <add>, %30, %cst_12 [1] : vector<16x128xf32> to vector<16xf32>
    %32 = vector.shape_cast %31 : vector<16xf32> to vector<16x1xf32>
    %33 = vector.extract_strided_slice %3 {offsets = [0, 4], sizes = [16, 1], strides = [1, 1]} : vector<16x8xi32> to vector<16x1xi32>
    %34 = vector.broadcast %33 : vector<16x1xi32> to vector<16x128xi32>
    %35 = arith.cmpi eq, %4, %34 : vector<16x128xi32>
    %cst_13 = arith.constant 0.000000e+00 : f32
    %36 = vector.broadcast %cst_13 : f32 to vector<16x128xf32>
    %37 = arith.select %35, %2, %36 : vector<16x128xi1>, vector<16x128xf32>
    %cst_14 = arith.constant dense<0.000000e+00> : vector<16xf32>
    %38 = vector.multi_reduction <add>, %37, %cst_14 [1] : vector<16x128xf32> to vector<16xf32>
    %39 = vector.shape_cast %38 : vector<16xf32> to vector<16x1xf32>
    %40 = vector.extract_strided_slice %3 {offsets = [0, 5], sizes = [16, 1], strides = [1, 1]} : vector<16x8xi32> to vector<16x1xi32>
    %41 = vector.broadcast %40 : vector<16x1xi32> to vector<16x128xi32>
    %42 = arith.cmpi eq, %4, %41 : vector<16x128xi32>
    %cst_15 = arith.constant 0.000000e+00 : f32
    %43 = vector.broadcast %cst_15 : f32 to vector<16x128xf32>
    %44 = arith.select %42, %2, %43 : vector<16x128xi1>, vector<16x128xf32>
    %cst_16 = arith.constant dense<0.000000e+00> : vector<16xf32>
    %45 = vector.multi_reduction <add>, %44, %cst_16 [1] : vector<16x128xf32> to vector<16xf32>
    %46 = vector.shape_cast %45 : vector<16xf32> to vector<16x1xf32>
    %47 = vector.extract_strided_slice %3 {offsets = [0, 6], sizes = [16, 1], strides = [1, 1]} : vector<16x8xi32> to vector<16x1xi32>
    %48 = vector.broadcast %47 : vector<16x1xi32> to vector<16x128xi32>
    %49 = arith.cmpi eq, %4, %48 : vector<16x128xi32>
    %cst_17 = arith.constant 0.000000e+00 : f32
    %50 = vector.broadcast %cst_17 : f32 to vector<16x128xf32>
    %51 = arith.select %49, %2, %50 : vector<16x128xi1>, vector<16x128xf32>
    %cst_18 = arith.constant dense<0.000000e+00> : vector<16xf32>
    %52 = vector.multi_reduction <add>, %51, %cst_18 [1] : vector<16x128xf32> to vector<16xf32>
    %53 = vector.shape_cast %52 : vector<16xf32> to vector<16x1xf32>
    %54 = vector.extract_strided_slice %3 {offsets = [0, 7], sizes = [16, 1], strides = [1, 1]} : vector<16x8xi32> to vector<16x1xi32>
    %55 = vector.broadcast %54 : vector<16x1xi32> to vector<16x128xi32>
    %56 = arith.cmpi eq, %4, %55 : vector<16x128xi32>
    %cst_19 = arith.constant 0.000000e+00 : f32
    %57 = vector.broadcast %cst_19 : f32 to vector<16x128xf32>
    %58 = arith.select %56, %2, %57 : vector<16x128xi1>, vector<16x128xf32>
    %cst_20 = arith.constant dense<0.000000e+00> : vector<16xf32>
    %59 = vector.multi_reduction <add>, %58, %cst_20 [1] : vector<16x128xf32> to vector<16xf32>
    %60 = vector.shape_cast %59 : vector<16xf32> to vector<16x1xf32>
    %61 = tpu.concatenate %11, %18, %25, %32, %39, %46, %53, %60 in 1 : vector<16x1xf32>, vector<16x1xf32>, vector<16x1xf32>, vector<16x1xf32>, vector<16x1xf32>, vector<16x1xf32>, vector<16x1xf32>, vector<16x1xf32> -> vector<16x8xf32>
    %c0_21 = arith.constant 0 : index
    %c0_22 = arith.constant 0 : index
    %62 = vector.load %arg4[%c0_21, %c0_22] : memref<16x8xf32, #tpu.memory_space<vmem>>, vector<16x8xf32>
    tpu.vector_store %arg4[%c0_21, %c0_22], %61 {strides = array<i32>} : memref<16x8xf32, #tpu.memory_space<vmem>>, vector<16x8xf32>,
    return
  }
  func.func @transform_0(%arg0: i32) -> (i32, i32) {
    %c0_i32 = arith.constant 0 : i32
    %c0_i32_0 = arith.constant 0 : i32
    return %arg0, %c0_i32 : i32, i32
  }
  func.func @transform_1(%arg0: i32) -> (i32, i32) {
    %c0_i32 = arith.constant 0 : i32
    %c0_i32_0 = arith.constant 0 : i32
    return %arg0, %c0_i32 : i32, i32
  }
  func.func @transform_2(%arg0: i32) -> (i32, i32) {
    %c0_i32 = arith.constant 0 : i32
    %c0_i32_0 = arith.constant 0 : i32
    %c0_i32_1 = arith.constant 0 : i32
    return %c0_i32, %c0_i32_0 : i32, i32
  }
  func.func @transform_3(%arg0: i32) -> (i32, i32) {
    %c0_i32 = arith.constant 0 : i32
    %c0_i32_0 = arith.constant 0 : i32
    return %arg0, %c0_i32 : i32, i32
  }
}

</mosaic_0001>

<llo_original>
// kernel: tpu_custom_call.1
$region0: #{tpu_custom_call.1}
  #allocation0 [shape = 'u32[]', space=smem, size = 0x4, offset = 0x4, fixed_abs, tag = 'smem constant byte address 0x4 - core index']
  #allocation1 [shape = 'u32[144,128]{1,0:T(1,128)}', space=vmem, size = 0x12000, scoped, tag = 'internal scratch']
  %s0 = inlined_call_operand.vmem [shape: s32[16,8], index: 0, kind: input, shape index: {}]
  %s1 = inlined_call_operand.vmem [shape: bf16[16,32], index: 1, kind: input, shape index: {}]
  %s2 = inlined_call_operand.vmem [shape: bf16[128,32], index: 2, kind: input, shape index: {}]
  %s3 = inlined_call_operand.vmem [shape: f32[16,8], index: 3, kind: output, shape index: {}]
  %s4 = sld [smem:[#allocation0]]
  $region22: #{tpu_custom_call.1} parent=0
    _
  %s6 = ssub.s32 1, %s4
  %s7 = scalar_select 0, %s6, %s4
  // Predicated region
  $region2: #{tpu_custom_call.1} parent=0 // pred_check
    _
  $region3: #{tpu_custom_call.1} parent=0 // pred_check_branch
    %9 = sbr.rel (0) target = $region5
  $region4: #{tpu_custom_call.1} parent=0 // pred_region
    _
  $region5: #{tpu_custom_call.1} parent=0 // pred_fallthru
    _
  // Predicated region
  $region6: #{tpu_custom_call.1} parent=0 // pred_check
    _
  $region7: #{tpu_custom_call.1} parent=0 // pred_check_branch
    %11 = sbr.rel (0) target = $region9
  $region8: #{tpu_custom_call.1} parent=0 // pred_region
    _
  $region9: #{tpu_custom_call.1} parent=0 // pred_fallthru
    _
  // Predicated region
  $region10: #{tpu_custom_call.1} parent=0 // pred_check
    _
  $region11: #{tpu_custom_call.1} parent=0 // pred_check_branch
    %13 = sbr.rel (0) target = $region13
  $region12: #{tpu_custom_call.1} parent=0 // pred_region
    _
  $region13: #{tpu_custom_call.1} parent=0 // pred_fallthru
    _
  %v15 = vld [vmem:[%s1] sm:$0xf]
  %v16 = vld [vmem:[%s1 + $0x4] sm:$0xf]
  %v17 = vld [vmem:[%s2] sm:$0xf]
  %v18 = vld [vmem:[%s2 + $0x4] sm:$0xf]
  %v19 = vld [vmem:[%s2 + $0x8] sm:$0xf]
  %v20 = vld [vmem:[%s2 + $0xc] sm:$0xf]
  %v21 = vld [vmem:[%s2 + $0x10] sm:$0xf]
  %v22 = vld [vmem:[%s2 + $0x14] sm:$0xf]
  %v23 = vld [vmem:[%s2 + $0x18] sm:$0xf]
  %v24 = vld [vmem:[%s2 + $0x1c] sm:$0xf]
  %v25 = vld [vmem:[%s2 + $0x20] sm:$0xf]
  %v26 = vld [vmem:[%s2 + $0x24] sm:$0xf]
  %v27 = vld [vmem:[%s2 + $0x28] sm:$0xf]
  %v28 = vld [vmem:[%s2 + $0x2c] sm:$0xf]
  %v29 = vld [vmem:[%s2 + $0x30] sm:$0xf]
  %v30 = vld [vmem:[%s2 + $0x34] sm:$0xf]
  %v31 = vld [vmem:[%s2 + $0x38] sm:$0xf]
  %v32 = vld [vmem:[%s2 + $0x3c] sm:$0xf]
  %v35 = vunpack.c.l.b16 %v15
  %v36 = vunpack.c.l.b16 %v16
  %v37 = vpack.c.b16 %v36, %v35
  %v54 = vunpack.c.l.b16 %v17
  %v55 = vunpack.c.l.b16 %v18
  %v56 = vunpack.c.l.b16 %v19
  %v57 = vunpack.c.l.b16 %v20
  %v58 = vunpack.c.l.b16 %v21
  %v59 = vunpack.c.l.b16 %v22
  %v60 = vunpack.c.l.b16 %v23
  %v61 = vunpack.c.l.b16 %v24
  %v62 = vunpack.c.l.b16 %v25
  %v63 = vunpack.c.l.b16 %v26
  %v64 = vunpack.c.l.b16 %v27
  %v65 = vunpack.c.l.b16 %v28
  %v66 = vunpack.c.l.b16 %v29
  %v67 = vunpack.c.l.b16 %v30
  %v68 = vunpack.c.l.b16 %v31
  %v69 = vunpack.c.l.b16 %v32
  %v70 = vpack.c.b16 %v55, %v54
  %v71 = vpack.c.b16 %v57, %v56
  %v72 = vpack.c.b16 %v59, %v58
  %v73 = vpack.c.b16 %v61, %v60
  %v74 = vpack.c.b16 %v63, %v62
  %v75 = vpack.c.b16 %v65, %v64
  %v76 = vpack.c.b16 %v67, %v66
  %v77 = vpack.c.b16 %v69, %v68
  %vm78 = vcmask 261120
  %v80 = vsel %vm78, %v37, 0
  %v83 = vsel %vm78, %v70, 0
  %v86 = vsel %vm78, %v71, 0
  %v89 = vsel %vm78, %v72, 0
  %v92 = vsel %vm78, %v73, 0
  %v95 = vsel %vm78, %v74, 0
  %v98 = vsel %vm78, %v75, 0
  %v101 = vsel %vm78, %v76, 0
  %v104 = vsel %vm78, %v77, 0
  %106 = vmatprep.subr.bf16.mxu0 0
  %107 = vmatpush1.bf16.xpose.msra.mxu0 %v104
  %108 = vmatprep.subr.bf16.mxu0 0
  %109 = vmatpush1.bf16.xpose.msra.mxu0 %v101
  %110 = vmatprep.subr.bf16.mxu0 0
  %111 = vmatpush1.bf16.xpose.msra.mxu0 %v98
  %112 = vmatprep.subr.bf16.mxu0 0
  %113 = vmatpush1.bf16.xpose.msra.mxu0 %v95
  %114 = vmatprep.subr.bf16.mxu0 0
  %115 = vmatpush1.bf16.xpose.msra.mxu0 %v92
  %116 = vmatprep.subr.bf16.mxu0 0
  %117 = vmatpush1.bf16.xpose.msra.mxu0 %v89
  %118 = vmatprep.subr.bf16.mxu0 0
  %119 = vmatpush1.bf16.xpose.msra.mxu0 %v86
  %120 = vmatprep.subr.bf16.mxu0 0
  %121 = vmatpush1.bf16.xpose.msra.mxu0 %v83
  %122 = vmatprep.subr.bf16.mxu0 0
  %123 = vmatpush2.bf16.xpose.msra.mxu0 0
  %124 = vmatprep.subr.bf16.mxu0 0
  %125 = vmatpush2.bf16.xpose.msra.mxu0 0
  %126 = vmatprep.subr.bf16.mxu0 0
  %127 = vmatpush2.bf16.xpose.msra.mxu0 0
  %128 = vmatprep.subr.bf16.mxu0 0
  %129 = vmatpush2.bf16.xpose.msra.mxu0 0
  %130 = vmatprep.subr.bf16.mxu0 0
  %131 = vmatpush2.bf16.xpose.msra.mxu0 0
  %132 = vmatprep.subr.bf16.mxu0 0
  %133 = vmatpush2.bf16.xpose.msra.mxu0 0
  %134 = vmatprep.subr.bf16.mxu0 0
  %135 = vmatpush2.bf16.xpose.msra.mxu0 0
  %136 = vmatprep.subr.bf16.mxu0 0
  %137 = vmatpush2.bf16.xpose.msra.mxu0 0
  %138 = vmatprep.mubr.bf16.mxu0 0
  %139 = vmatmul.mubr.bf16.gmra.mxu0 %v80
  %v140 = vpop.f32.mrf.mxu0
  %v141 = vadd.f32 0.0, %v140
  %v142 = vpop.f32.mrf.mxu0
  %v143 = vpop.f32.mrf.mxu0
  %v144 = vadd.f32 0.0, %v143
  %v145 = vpop.f32.mrf.mxu0
  %146 = vdwg.mxu0
  %v147 = vld [vmem:[%s0] sm:$0xff]
  %v148 = vld [vmem:[%s0 + $0x8] sm:$0xff]
  %v149 = vlaneseq
  %v150 = vand.u32 %v149, 127
  %151 = vset.pattern.permute.xlu0 0
  %152 = vperm.xlu0 %151, %v147
  %v153 = vpop.permute.xlu0 %152
  %154 = vset.pattern.permute.xlu0 0
  %155 = vperm.xlu0 %154, %v148
  %v156 = vpop.permute.xlu0 %155
  %vm157 = vcmp.eq.s32.totalorder %v150, %v153
  %vm158 = vcmp.eq.s32.totalorder %v150, %v156
  %v159 = vsel %vm157, %v141, 0.0
  %v160 = vsel %vm158, %v144, 0.0
  %161 = vadd.xlane.f32.xlu0 %v159
  %v162 = vpop.xlane.xlu0 %161
  %163 = vadd.xlane.f32.xlu0 %v160
  %v164 = vpop.xlane.xlu0 %163
  %165 = vset.pattern.permute.xlu0 1
  %166 = vperm.xlu0 %165, %v147
  %v167 = vpop.permute.xlu0 %166
  %168 = vset.pattern.permute.xlu0 1
  %169 = vperm.xlu0 %168, %v148
  %v170 = vpop.permute.xlu0 %169
  %vm171 = vcmp.eq.s32.totalorder %v150, %v167
  %vm172 = vcmp.eq.s32.totalorder %v150, %v170
  %v173 = vsel %vm171, %v141, 0.0
  %v174 = vsel %vm172, %v144, 0.0
  %175 = vadd.xlane.f32.xlu0 %v173
  %v176 = vpop.xlane.xlu0 %175
  %177 = vadd.xlane.f32.xlu0 %v174
  %v178 = vpop.xlane.xlu0 %177
  %179 = vset.pattern.permute.xlu0 2
  %180 = vperm.xlu0 %179, %v147
  %v181 = vpop.permute.xlu0 %180
  %182 = vset.pattern.permute.xlu0 2
  %183 = vperm.xlu0 %182, %v148
  %v184 = vpop.permute.xlu0 %183
  %vm185 = vcmp.eq.s32.totalorder %v150, %v181
  %vm186 = vcmp.eq.s32.totalorder %v150, %v184
  %v187 = vsel %vm185, %v141, 0.0
  %v188 = vsel %vm186, %v144, 0.0
  %189 = vadd.xlane.f32.xlu0 %v187
  %v190 = vpop.xlane.xlu0 %189
  %191 = vadd.xlane.f32.xlu0 %v188
  %v192 = vpop.xlane.xlu0 %191
  %193 = vset.pattern.permute.xlu0 3
  %194 = vperm.xlu0 %193, %v147
  %v195 = vpop.permute.xlu0 %194
  %196 = vset.pattern.permute.xlu0 3
  %197 = vperm.xlu0 %196, %v148
  %v198 = vpop.permute.xlu0 %197
  %vm199 = vcmp.eq.s32.totalorder %v150, %v195
  %vm200 = vcmp.eq.s32.totalorder %v150, %v198
  %v201 = vsel %vm199, %v141, 0.0
  %v202 = vsel %vm200, %v144, 0.0
  %203 = vadd.xlane.f32.xlu0 %v201
  %v204 = vpop.xlane.xlu0 %203
  %205 = vadd.xlane.f32.xlu0 %v202
  %v206 = vpop.xlane.xlu0 %205
  %207 = vset.pattern.permute.xlu0 4
  %208 = vperm.xlu0 %207, %v147
  %v209 = vpop.permute.xlu0 %208
  %210 = vset.pattern.permute.xlu0 4
  %211 = vperm.xlu0 %210, %v148
  %v212 = vpop.permute.xlu0 %211
  %vm213 = vcmp.eq.s32.totalorder %v150, %v209
  %vm214 = vcmp.eq.s32.totalorder %v150, %v212
  %v215 = vsel %vm213, %v141, 0.0
  %v216 = vsel %vm214, %v144, 0.0
  %217 = vadd.xlane.f32.xlu0 %v215
  %v218 = vpop.xlane.xlu0 %217
  %219 = vadd.xlane.f32.xlu0 %v216
  %v220 = vpop.xlane.xlu0 %219
  %221 = vset.pattern.permute.xlu0 5
  %222 = vperm.xlu0 %221, %v147
  %v223 = vpop.permute.xlu0 %222
  %224 = vset.pattern.permute.xlu0 5
  %225 = vperm.xlu0 %224, %v148
  %v226 = vpop.permute.xlu0 %225
  %vm227 = vcmp.eq.s32.totalorder %v150, %v223
  %vm228 = vcmp.eq.s32.totalorder %v150, %v226
  %v229 = vsel %vm227, %v141, 0.0
  %v230 = vsel %vm228, %v144, 0.0
  %231 = vadd.xlane.f32.xlu0 %v229
  %v232 = vpop.xlane.xlu0 %231
  %233 = vadd.xlane.f32.xlu0 %v230
  %v234 = vpop.xlane.xlu0 %233
  %235 = vset.pattern.permute.xlu0 6
  %236 = vperm.xlu0 %235, %v147
  %v237 = vpop.permute.xlu0 %236
  %238 = vset.pattern.permute.xlu0 6
  %239 = vperm.xlu0 %238, %v148
  %v240 = vpop.permute.xlu0 %239
  %vm241 = vcmp.eq.s32.totalorder %v150, %v237
  %vm242 = vcmp.eq.s32.totalorder %v150, %v240
  %v243 = vsel %vm241, %v141, 0.0
  %v244 = vsel %vm242, %v144, 0.0
  %245 = vadd.xlane.f32.xlu0 %v243
  %v246 = vpop.xlane.xlu0 %245
  %247 = vadd.xlane.f32.xlu0 %v244
  %v248 = vpop.xlane.xlu0 %247
  %249 = vset.pattern.permute.xlu0 7
  %250 = vperm.xlu0 %249, %v147
  %v251 = vpop.permute.xlu0 %250
  %252 = vset.pattern.permute.xlu0 7
  %253 = vperm.xlu0 %252, %v148
  %v254 = vpop.permute.xlu0 %253
  %vm255 = vcmp.eq.s32.totalorder %v150, %v251
  %vm256 = vcmp.eq.s32.totalorder %v150, %v254
  %v257 = vsel %vm255, %v141, 0.0
  %v258 = vsel %vm256, %v144, 0.0
  %259 = vadd.xlane.f32.xlu0 %v257
  %v260 = vpop.xlane.xlu0 %259
  %261 = vadd.xlane.f32.xlu0 %v258
  %v262 = vpop.xlane.xlu0 %261
  %vm263 = vcmask 7168
  %v264 = vsel %vm263, %v162, %v176
  %v265 = vsel %vm263, %v164, %v178
  %vm266 = vcmask 15360
  %v267 = vsel %vm266, %v264, %v190
  %v268 = vsel %vm266, %v265, %v192
  %vm269 = vcmask 23552
  %v270 = vsel %vm269, %v267, %v204
  %v271 = vsel %vm269, %v268, %v206
  %vm272 = vcmask 31744
  %v273 = vsel %vm272, %v270, %v218
  %v274 = vsel %vm272, %v271, %v220
  %vm275 = vcmask 39936
  %v276 = vsel %vm275, %v273, %v232
  %v277 = vsel %vm275, %v274, %v234
  %vm278 = vcmask 48128
  %v279 = vsel %vm278, %v276, %v246
  %v280 = vsel %vm278, %v277, %v248
  %vm281 = vcmask 56320
  %v282 = vsel %vm281, %v279, %v260
  %v283 = vsel %vm281, %v280, %v262
  %vm284 = vcmask 64512
  %285 = vst.msk [vmem:[%s3] sm:$0xff] %vm284, %v282
  %286 = vst.msk [vmem:[%s3 + $0x8] sm:$0xff] %vm284, %v283
  // Predicated region
  $region14: #{tpu_custom_call.1} parent=0 // pred_check
    _
  $region15: #{tpu_custom_call.1} parent=0 // pred_check_branch
    %288 = sbr.rel (0) target = $region17
  $region16: #{tpu_custom_call.1} parent=0 // pred_region
    _
  $region17: #{tpu_custom_call.1} parent=0 // pred_fallthru
    _
  // Predicated region
  $region18: #{tpu_custom_call.1} parent=0 // pred_check
    _
  $region19: #{tpu_custom_call.1} parent=0 // pred_check_branch
    %290 = sbr.rel (0) target = $region21
  $region20: #{tpu_custom_call.1} parent=0 // pred_region
    _
  $region21: #{tpu_custom_call.1} parent=0 // pred_fallthru
    _

</llo_original>
